<compile_context>
chip_gen: v6e
topology: v6e:2x2x1
jax: 0.10.0
libtpu: 0.0.40
codegen_flags: <defaults>
</compile_context>

<pallas_src>
from functools import partial

import jax
import jax.numpy as jnp
from jax.experimental import pallas as pl
from jax.experimental.pallas import tpu as pltpu


def _round_up(x: int, m: int) -> int:
    return (x + m - 1) // m * m


def _proj_kernel(seed_ref, x_ref, w1_ref, b1_ref, w2_ref, b2_ref, o_ref,
                 *, training: bool, keep_prob: float):
    """One batch tile of: y = dropout(relu(x @ W1 + b1)) @ W2 + b2."""
    x = x_ref[...]                                   # (bm, IF)  -- feature dim NOT padded
    w1 = w1_ref[...]                                 # (IF, IFp), f32 or bf16

    # Layer 1 on the MXU (f32 accumulation); bias + ReLU on the VPU in f32.
    h = jnp.dot(x.astype(w1.dtype), w1, preferred_element_type=jnp.float32)
    h = h + b1_ref[...]                              # (1, IFp) broadcasts over sublanes
    h = jnp.maximum(h, 0.0)                          # (bm, IFp), lane-dense

    # Dropout(p = 1 - keep_prob); identity in eval mode (PyTorch semantics).
    if training and keep_prob < 1.0:
        # Counter-based mask: splitmix32 finalizer over (global element index, seed).
        # Pure integer VPU ops -> works on TPU and in interpret mode; seed change = no recompile.
        seed = seed_ref[0].astype(jnp.uint32)
        row0 = (pl.program_id(0) * h.shape[0]).astype(jnp.uint32)
        rows = jax.lax.broadcasted_iota(jnp.uint32, h.shape, 0) + row0
        cols = jax.lax.broadcasted_iota(jnp.uint32, h.shape, 1)
        z = rows * jnp.uint32(h.shape[1]) + cols + seed * jnp.uint32(0x9E3779B9)
        z = (z ^ (z >> 16)) * jnp.uint32(0x7FEB352D)
        z = (z ^ (z >> 15)) * jnp.uint32(0x846CA68B)
        z = z ^ (z >> 16)
        threshold = min(int(round(keep_prob * 4294967296.0)), 4294967295)
        keep = z < jnp.uint32(threshold)
        # 1/keep_prob is folded into W2 (prepare_params w2_scale) -> plain mask only.
        h = jnp.where(keep, h, 0.0)

    # Layer 2 on the MXU.
    w2 = w2_ref[...]                                 # (IFp, Hp)
    y = jnp.dot(h.astype(w2.dtype), w2, preferred_element_type=jnp.float32) + b2_ref[...]
    o_ref[...] = y.astype(o_ref.dtype)


def prepare_params(w1, b1, w2, b2, *, matmul_dtype=jnp.bfloat16, w2_scale=1.0):
    """One-time (outside the hot path) transpose + pad of the parameters.

    nn.Linear stores weight as (out, in); we store W^T as (in, out).
      W1^T: (IF, IFp)   -- input dim left at IF (x is streamed unpadded), hidden padded to 128.
      W2^T: (IFp, Hp)   -- zero pad rows/cols keep the math exact.
    For training, pass w2_scale = 1/keep_prob (e.g. 2.0 for p=0.5) to fold the dropout scale
    into W2 once, instead of a per-element multiply in the kernel.
    """
    IF = w1.shape[1]
    H = w2.shape[0]
    IFp = _round_up(IF, 128)
    Hp = _round_up(H, 128)

    w1_t = jnp.zeros((IF, IFp), matmul_dtype).at[:, :IF].set(w1.T.astype(matmul_dtype))
    w2_scaled = (w2.T.astype(jnp.float32) * jnp.float32(w2_scale)).astype(matmul_dtype)
    w2_t = jnp.zeros((IFp, Hp), matmul_dtype).at[:IF, :H].set(w2_scaled)
    b1_2d = jnp.zeros((1, IFp), jnp.float32).at[0, :IF].set(b1.astype(jnp.float32))
    b2_2d = jnp.zeros((1, Hp), jnp.float32).at[0, :H].set(b2.astype(jnp.float32))
    return w1_t, b1_2d, w2_t, b2_2d


def projection_network_forward(x, w1_t, b1_2d, w2_t, b2_2d, seed, *,
                               out_features, training=False, p=0.5,
                               block_m=1024, out_dtype=None):
    """x: (B, in_feature). Weights/biases come pre-padded from prepare_params().

    For training=True, w2_t must have been built with w2_scale = 1/(1-p).
    out_dtype=jnp.bfloat16 halves the output HBM stream if the consumer allows it.
    """
    B, IF = x.shape
    assert w1_t.shape[0] == IF
    IFp = w1_t.shape[1]
    Hp = w2_t.shape[1]
    H = out_features
    out_dtype = x.dtype if out_dtype is None else out_dtype

    # Batch tile: large (amortize ~0.35us/step grid overhead), multiple of 8 sublanes, and
    # capped at ceil(B/2) so the parallel batch axis has >=2 steps (v7x dual-TC sharding).
    # No batch padding: grid = cdiv(B, bm); the partial last block is masked on write.
    half = _round_up(max(1, -(-B // 2)), 8)
    bm = max(8, min(_round_up(block_m, 8), half))
    grid_m = pl.cdiv(B, bm)

    seed_arr = jnp.asarray(seed, jnp.int32).reshape((1,))
    kernel = partial(_proj_kernel, training=training, keep_prob=1.0 - p)

    isz = lambda a: jnp.dtype(a.dtype).itemsize
    cost = pl.CostEstimate(
        flops=2 * B * IF * IFp + 2 * B * IFp * Hp,
        transcendentals=0,
        bytes_accessed=(x.size * isz(x) + w1_t.size * isz(w1_t) + w2_t.size * isz(w2_t)
                        + b1_2d.size * 4 + b2_2d.size * 4
                        + B * Hp * jnp.dtype(out_dtype).itemsize),
    )

    # NOTE: W1/W2 are held resident in VMEM (constant index maps): ~(32x128 + 128x128) elems,
    # trivially small. If IF/H are ever scaled up, re-budget against v7x's 64 MiB VMEM
    # (set vmem_limit_bytes and add a K-tiling "arbitrary" grid axis + f32 accumulator).
    out = pl.pallas_call(
        kernel,
        out_shape=jax.ShapeDtypeStruct((B, Hp), out_dtype),
        grid_spec=pltpu.PrefetchScalarGridSpec(
            num_scalar_prefetch=1,                    # seed -> SMEM, no recompile on change
            grid=(grid_m,),
            in_specs=[
                pl.BlockSpec((bm, IF),    lambda i, s: (i, 0)),   # x tile, unpadded features
                pl.BlockSpec(w1_t.shape,  lambda i, s: (0, 0)),   # W1^T (resident)
                pl.BlockSpec(b1_2d.shape, lambda i, s: (0, 0)),   # b1
                pl.BlockSpec(w2_t.shape,  lambda i, s: (0, 0)),   # W2^T (resident)
                pl.BlockSpec(b2_2d.shape, lambda i, s: (0, 0)),   # b2
            ],
            out_specs=pl.BlockSpec((bm, Hp), lambda i, s: (i, 0)),
        ),
        compiler_params=pltpu.CompilerParams(
            dimension_semantics=("parallel",)),       # batch axis shards across TCs on v7x
        cost_estimate=cost,
    )(seed_arr, x, w1_t, b1_2d, w2_t, b2_2d)

    if Hp != H:
        out = out[:, :H]
    return out


if __name__ == "__main__":
    # Small, deterministic setup consistent with the module:
    #   in_feature = 32, hidden_size = 128, batch = 16
    B, IF, H = 16, 32, 128

    key = jax.random.PRNGKey(0)
    kx, kw1, kb1, kw2, kb2 = jax.random.split(key, 5)

    x = jax.random.normal(kx, (B, IF), dtype=jnp.float32)
    # nn.Linear parameter shapes: weight (out, in), bias (out,)
    w1 = jax.random.normal(kw1, (IF, IF), dtype=jnp.float32) * 0.1
    b1 = jax.random.normal(kb1, (IF,), dtype=jnp.float32) * 0.1
    w2 = jax.random.normal(kw2, (H, IF), dtype=jnp.float32) * 0.1
    b2 = jax.random.normal(kb2, (H,), dtype=jnp.float32) * 0.1

    # One-time parameter prep (transpose + pad), kept out of the per-step hot path.
    params_f32 = prepare_params(w1, b1, w2, b2, matmul_dtype=jnp.float32)
    params_bf16 = prepare_params(w1, b1, w2, b2)                       # bf16 default (v6e/v7x)
    params_f32_train = prepare_params(w1, b1, w2, b2, matmul_dtype=jnp.float32,
                                      w2_scale=2.0)                    # 1/keep_prob folded

    fwd = jax.jit(projection_network_forward,
                  static_argnames=("out_features", "training", "p", "block_m", "out_dtype"))

    seed0 = jnp.array(0, jnp.int32)

    # Eval-mode forward (dropout is identity), matching module.eval() semantics.
    out = jax.block_until_ready(fwd(x, *params_f32, seed0, out_features=H, training=False))
    ref = jnp.maximum(x @ w1.T + b1, 0.0) @ w2.T + b2
    assert out.shape == (B, H)
    assert jnp.allclose(out, ref, atol=1e-4, rtol=1e-4)

    # bf16-MXU operand path (v6e/v7x fast path, f32 accumulation) — looser tolerance.
    out_bf16 = jax.block_until_ready(
        fwd(x, *params_bf16, seed0, out_features=H, training=False))
    assert jnp.allclose(out_bf16, ref, atol=5e-2, rtol=5e-2)

    # Ragged batch (no pad / no slice path): grid = cdiv(B, bm), last block write-masked.
    x13 = x[:13]
    out13 = jax.block_until_ready(
        fwd(x13, *params_f32, seed0, out_features=H, training=False))
    assert out13.shape == (13, H)
    assert jnp.allclose(out13, ref[:13], atol=1e-4, rtol=1e-4)

    # Training-mode smoke test (counter-based dropout, scale folded into W2).
    out_tr = jax.block_until_ready(
        fwd(x, *params_f32_train, seed0, out_features=H, training=True))
    assert out_tr.shape == (B, H) and bool(jnp.all(jnp.isfinite(out_tr)))
    assert not jnp.allclose(out_tr, out, atol=1e-6)     # dropout actually did something

    # Seed lives in SMEM via scalar prefetch -> a new seed reuses the compiled kernel.
    out_tr2 = jax.block_until_ready(
        fwd(x, *params_f32_train, jnp.array(7, jnp.int32), out_features=H, training=True))
    assert out_tr2.shape == (B, H)
    assert not jnp.allclose(out_tr, out_tr2, atol=1e-6)  # different seed -> different mask

    print("KERNEL_OK")
</pallas_src>

<mosaic_0001>
module attributes {stable_mosaic.version = 11 : i64} {
  func.func @_proj_kernel(%arg0: i32, %arg1: memref<1xi32, #tpu.memory_space<smem>>, %arg2: memref<8x32xf32, #tpu.memory_space<vmem>>, %arg3: memref<32x128xf32, #tpu.memory_space<vmem>>, %arg4: memref<1x128xf32, #tpu.memory_space<vmem>>, %arg5: memref<128x128xf32, #tpu.memory_space<vmem>>, %arg6: memref<1x128xf32, #tpu.memory_space<vmem>>, %arg7: memref<8x128xf32, #tpu.memory_space<vmem>>) attributes {dimension_semantics = [#tpu.dimension_semantics<parallel>], iteration_bounds = array<i64: 2>, scalar_prefetch = 1 : i64, scratch_operands = 0 : i64, tpu.core_type = #tpu.core_type<tc>, window_params = [{transform_indices = @transform_0, window_bounds = array<i64: 8, 32>}, {pipeline_mode = #tpu.pipeline_mode<synchronous>, transform_indices = @transform_1, window_bounds = array<i64: 32, 128>}, {pipeline_mode = #tpu.pipeline_mode<synchronous>, transform_indices = @transform_2, window_bounds = array<i64: 1, 128>}, {pipeline_mode = #tpu.pipeline_mode<synchronous>, transform_indices = @transform_3, window_bounds = array<i64: 128, 128>}, {pipeline_mode = #tpu.pipeline_mode<synchronous>, transform_indices = @transform_4, window_bounds = array<i64: 1, 128>}, {transform_indices = @transform_5, window_bounds = array<i64: 8, 128>}]} {
    %c0 = arith.constant 0 : index
    %c0_0 = arith.constant 0 : index
    %0 = vector.load %arg2[%c0, %c0_0] : memref<8x32xf32, #tpu.memory_space<vmem>>, vector<8x32xf32>
    %c0_1 = arith.constant 0 : index
    %c0_2 = arith.constant 0 : index
    %1 = vector.load %arg3[%c0_1, %c0_2] : memref<32x128xf32, #tpu.memory_space<vmem>>, vector<32x128xf32>
    %cst = arith.constant dense<0.000000e+00> : vector<8x128xf32>
    %2 = tpu.matmul %0, %1, %cst {dimension_numbers = #tpu.dot_dimension_numbers<[1], [0], [0], [1], [0, 0, 1, 1], [], []>} : vector<8x32xf32>, vector<32x128xf32>, vector<8x128xf32> -> vector<8x128xf32>
    %c0_3 = arith.constant 0 : index
    %c0_4 = arith.constant 0 : index
    %3 = vector.load %arg4[%c0_3, %c0_4] : memref<1x128xf32, #tpu.memory_space<vmem>>, vector<1x128xf32>
    %4 = vector.broadcast %3 : vector<1x128xf32> to vector<8x128xf32>
    %5 = arith.addf %2, %4 : vector<8x128xf32>
    %cst_5 = arith.constant 0.000000e+00 : f32
    %6 = vector.broadcast %cst_5 : f32 to vector<8x128xf32>
    %7 = arith.maximumf %5, %6 : vector<8x128xf32>
    %c0_6 = arith.constant 0 : index
    %c0_7 = arith.constant 0 : index
    %8 = vector.load %arg5[%c0_6, %c0_7] : memref<128x128xf32, #tpu.memory_space<vmem>>, vector<128x128xf32>
    %cst_8 = arith.constant dense<0.000000e+00> : vector<8x128xf32>
    %9 = tpu.matmul %7, %8, %cst_8 {dimension_numbers = #tpu.dot_dimension_numbers<[1], [0], [0], [1], [0, 0, 1, 1], [], []>} : vector<8x128xf32>, vector<128x128xf32>, vector<8x128xf32> -> vector<8x128xf32>
    %c0_9 = arith.constant 0 : index
    %c0_10 = arith.constant 0 : index
    %10 = vector.load %arg6[%c0_9, %c0_10] : memref<1x128xf32, #tpu.memory_space<vmem>>, vector<1x128xf32>
    %11 = vector.broadcast %10 : vector<1x128xf32> to vector<8x128xf32>
    %12 = arith.addf %9, %11 : vector<8x128xf32>
    %c0_11 = arith.constant 0 : index
    %c0_12 = arith.constant 0 : index
    %13 = vector.load %arg7[%c0_11, %c0_12] : memref<8x128xf32, #tpu.memory_space<vmem>>, vector<8x128xf32>
    tpu.vector_store %arg7[%c0_11, %c0_12], %12 {strides = array<i32>} : memref<8x128xf32, #tpu.memory_space<vmem>>, vector<8x128xf32>,
    return
  }
  func.func @transform_0(%arg0: i32, %arg1: memref<1xi32, #tpu.memory_space<smem>>) -> (i32, i32) {
    %c0_i32 = arith.constant 0 : i32
    %c0_i32_0 = arith.constant 0 : i32
    return %arg0, %c0_i32 : i32, i32
  }
  func.func @transform_1(%arg0: i32, %arg1: memref<1xi32, #tpu.memory_space<smem>>) -> (i32, i32) {
    %c0_i32 = arith.constant 0 : i32
    %c0_i32_0 = arith.constant 0 : i32
    %c0_i32_1 = arith.constant 0 : i32
    return %c0_i32, %c0_i32_0 : i32, i32
  }
  func.func @transform_2(%arg0: i32, %arg1: memref<1xi32, #tpu.memory_space<smem>>) -> (i32, i32) {
    %c0_i32 = arith.constant 0 : i32
    %c0_i32_0 = arith.constant 0 : i32
    %c0_i32_1 = arith.constant 0 : i32
    return %c0_i32, %c0_i32_0 : i32, i32
  }
  func.func @transform_3(%arg0: i32, %arg1: memref<1xi32, #tpu.memory_space<smem>>) -> (i32, i32) {
    %c0_i32 = arith.constant 0 : i32
    %c0_i32_0 = arith.constant 0 : i32
    %c0_i32_1 = arith.constant 0 : i32
    return %c0_i32, %c0_i32_0 : i32, i32
  }
  func.func @transform_4(%arg0: i32, %arg1: memref<1xi32, #tpu.memory_space<smem>>) -> (i32, i32) {
    %c0_i32 = arith.constant 0 : i32
    %c0_i32_0 = arith.constant 0 : i32
    %c0_i32_1 = arith.constant 0 : i32
    return %c0_i32, %c0_i32_0 : i32, i32
  }
  func.func @transform_5(%arg0: i32, %arg1: memref<1xi32, #tpu.memory_space<smem>>) -> (i32, i32) {
    %c0_i32 = arith.constant 0 : i32
    %c0_i32_0 = arith.constant 0 : i32
    return %arg0, %c0_i32 : i32, i32
  }
}

</mosaic_0001>

<llo_original>
// kernel: projection_network_forward.1
$region0: #{projection_network_forward.1}
  #allocation0 [shape = 'u32[]', space=smem, size = 0x4, offset = 0x4, fixed_abs, tag = 'smem constant byte address 0x4 - core index']
  #allocation1 [shape = 'u32[144,128]{1,0:T(1,128)}', space=vmem, size = 0x12000, scoped, tag = 'internal scratch']
  #allocation2 [shape = 's32[1]{0}', space=sflag, size = 0x4, scoped, tag = 'scoped memory for projection_network_forward.1']
  #allocation3 [shape = 's32[1]{0:T(128)S(6)}', space=smem, size = 0x200, scoped, tag = 'prefetched SMEM operand 0']
  %s0 = inlined_call_operand.<no memory space> [shape: s32[1], index: 0, kind: input, shape index: {}]
  %s1 = inlined_call_operand.hbm [shape: f32[16,32], index: 1, kind: input, shape index: {}]
  %s2 = inlined_call_operand.hbm [shape: f32[32,128], index: 2, kind: input, shape index: {}]
  %s3 = inlined_call_operand.vmem [shape: f32[1,128], index: 3, kind: input, shape index: {}]
  %s4 = inlined_call_operand.hbm [shape: f32[128,128], index: 4, kind: input, shape index: {}]
  %s5 = inlined_call_operand.vmem [shape: f32[1,128], index: 5, kind: input, shape index: {}]
  %s6 = inlined_call_operand.hbm [shape: f32[16,128], index: 6, kind: output, shape index: {}]
  %s7 = sld [smem:[#allocation0]]
  $region65: #{projection_network_forward.1} parent=0
    _
  %s9 = ssub.s32 1, %s7
  %s10 = scalar_select 0, %s9, %s7
  %11 = sst [smem:[#allocation3]] %s0
  $region1: #{projection_network_forward.1} parent=0
    #allocation4 [shape = 'u8[8192]{0}', space=vmem, size = 0x2000, scoped, tag = 'input window, operand 1']
    #allocation5 [shape = 's32[2]{0}', space=sflag, size = 0x8, scoped, tag = 'scoped memory for projection_network_forward.1']
    #allocation6 [shape = 's32[2]{0}', space=sflag, size = 0x8, scoped, tag = 'scoped memory for projection_network_forward.1']
    #allocation7 [shape = 'u8[16384]{0}', space=vmem, size = 0x4000, scoped, tag = 'input window, operand 2, single buffered']
    #allocation8 [shape = 's32[1]{0}', space=sflag, size = 0x4, scoped, tag = 'scoped memory for projection_network_forward.1']
    #allocation9 [shape = 'u8[65536]{0}', space=vmem, size = 0x10000, scoped, tag = 'input window, operand 4, single buffered']
    #allocation10 [shape = 'u8[8192]{0}', space=vmem, size = 0x2000, scoped, tag = 'output window, operand 0']
    %12 = vsyncpa [#allocation5], 0
    %s13 = scalar_lea.sflag [#allocation5], 1
    %14 = vsyncpa %s13, 0
    %15 = vsyncpa [#allocation8], 0
    %16 = vsyncpa [#allocation6], 0
    %s17 = scalar_lea.sflag [#allocation6], 1
    %18 = vsyncpa %s17, 0
    loop: start=0, step=1, limit=4
    $region2: #{projection_network_forward.1} parent=1 // loop_pre_header
      _
    $region3: #{projection_network_forward.1} parent=1 // loop_header
      %s20 = sphi 0, %s24
      %p21 = scmp.ge.s32.totalorder %s20, 4
      %s30 = sphi 0, %s32
      %s33 = sphi 0, %s30
      %s34 = sphi 0, %s33
      %s50 = sphi 0, %s34
      %s54 = sphi 0, %s54
      %s56 = sphi 0, %s54
      %s57 = sphi 0, %s56
      %s71 = sphi 0, %s57
      %s75 = sphi 0, %s75
      %s77 = sphi 0, %s75
      %s78 = sphi 0, %s77
      %s92 = sphi 0, %s78
      %s96 = sphi 0, %s96
      %s98 = sphi 0, %s96
      %s99 = sphi 0, %s98
      %s113 = sphi 0, %s99
      %s117 = sphi 0, %s117
      %s119 = sphi 0, %s117
      %s120 = sphi 0, %s119
      %s134 = sphi 0, %s120
      %s140 = sphi 0, %s142
      %s143 = sphi 0, %s140
      %s144 = sphi 0, %s143
      %s160 = sphi 0, %s144
    $region4: #{projection_network_forward.1} parent=1 // loop_header_branch
      %23 = sbr.rel (%p21) target = $region8
    $region5: #{projection_network_forward.1} parent=1 // loop_body
      %s25 = ssub.s32 %s20, 1
      %s26 = ssub.s32 %s20, 2
      %s27 = sadd.s32 %s20, 1
      %s28 = ssub.s32 %s20, %s27
      %p29 = scmp.eq.s32.totalorder %s28, 0
      %s31 = sadd.s32 %s30, 1
      %s32 = scalar_select %p29, %s30, %s31
      %p35 = pneg %p29
      %p36 = scmp.eq.s32.totalorder %s20, 1
      %p37 = por %p35, %p36
      %p38 = scmp.ne.s32.totalorder %s30, %s33
      %p39 = scmp.eq.s32.totalorder %s20, 0
      %p40 = por %p38, %p39
      %p41 = scmp.ne.s32.totalorder %s30, %s33
      %p42 = scmp.eq.s32.totalorder %s25, 1
      %p43 = por %p41, %p42
      %p44 = scmp.ne.s32.totalorder %s33, %s34
      %p45 = scmp.eq.s32.totalorder %s25, 0
      %p46 = por %p44, %p45
      %p47 = scmp.ne.s32.totalorder %s33, %s34
      %p48 = scmp.eq.s32.totalorder %s26, 1
      %p49 = por %p47, %p48
      %p51 = scmp.ne.s32.totalorder %s34, %s50
      %p52 = scmp.eq.s32.totalorder %s26, 0
      %p53 = por %p51, %p52
      %s55 = sadd.s32 %s54, 1
      %p58 = scmp.eq.s32.totalorder %s20, 1
      %p59 = scmp.ne.s32.totalorder %s54, %s56
      %p60 = scmp.eq.s32.totalorder %s20, 0
      %p61 = por %p59, %p60
      %p62 = scmp.ne.s32.totalorder %s54, %s56
      %p63 = scmp.eq.s32.totalorder %s25, 1
      %p64 = por %p62, %p63
      %p65 = scmp.ne.s32.totalorder %s56, %s57
      %p66 = scmp.eq.s32.totalorder %s25, 0
      %p67 = por %p65, %p66
      %p68 = scmp.ne.s32.totalorder %s56, %s57
      %p69 = scmp.eq.s32.totalorder %s26, 1
      %p70 = por %p68, %p69
      %p72 = scmp.ne.s32.totalorder %s57, %s71
      %p73 = scmp.eq.s32.totalorder %s26, 0
      %p74 = por %p72, %p73
      %s76 = sadd.s32 %s75, 1
      %p79 = scmp.eq.s32.totalorder %s20, 1
      %p80 = scmp.ne.s32.totalorder %s75, %s77
      %p81 = scmp.eq.s32.totalorder %s20, 0
      %p82 = por %p80, %p81
      %p83 = scmp.ne.s32.totalorder %s75, %s77
      %p84 = scmp.eq.s32.totalorder %s25, 1
      %p85 = por %p83, %p84
      %p86 = scmp.ne.s32.totalorder %s77, %s78
      %p87 = scmp.eq.s32.totalorder %s25, 0
      %p88 = por %p86, %p87
      %p89 = scmp.ne.s32.totalorder %s77, %s78
      %p90 = scmp.eq.s32.totalorder %s26, 1
      %p91 = por %p89, %p90
      %p93 = scmp.ne.s32.totalorder %s78, %s92
      %p94 = scmp.eq.s32.totalorder %s26, 0
      %p95 = por %p93, %p94
      %s97 = sadd.s32 %s96, 1
      %p100 = scmp.eq.s32.totalorder %s20, 1
      %p101 = scmp.ne.s32.totalorder %s96, %s98
      %p102 = scmp.eq.s32.totalorder %s20, 0
      %p103 = por %p101, %p102
      %p104 = scmp.ne.s32.totalorder %s96, %s98
      %p105 = scmp.eq.s32.totalorder %s25, 1
      %p106 = por %p104, %p105
      %p107 = scmp.ne.s32.totalorder %s98, %s99
      %p108 = scmp.eq.s32.totalorder %s25, 0
      %p109 = por %p107, %p108
      %p110 = scmp.ne.s32.totalorder %s98, %s99
      %p111 = scmp.eq.s32.totalorder %s26, 1
      %p112 = por %p110, %p111
      %p114 = scmp.ne.s32.totalorder %s99, %s113
      %p115 = scmp.eq.s32.totalorder %s26, 0
      %p116 = por %p114, %p115
      %s118 = sadd.s32 %s117, 1
      %p121 = scmp.eq.s32.totalorder %s20, 1
      %p122 = scmp.ne.s32.totalorder %s117, %s119
      %p123 = scmp.eq.s32.totalorder %s20, 0
      %p124 = por %p122, %p123
      %p125 = scmp.ne.s32.totalorder %s117, %s119
      %p126 = scmp.eq.s32.totalorder %s25, 1
      %p127 = por %p125, %p126
      %p128 = scmp.ne.s32.totalorder %s119, %s120
      %p129 = scmp.eq.s32.totalorder %s25, 0
      %p130 = por %p128, %p129
      %p131 = scmp.ne.s32.totalorder %s119, %s120
      %p132 = scmp.eq.s32.totalorder %s26, 1
      %p133 = por %p131, %p132
      %p135 = scmp.ne.s32.totalorder %s120, %s134
      %p136 = scmp.eq.s32.totalorder %s26, 0
      %p137 = por %p135, %p136
      %s138 = ssub.s32 %s20, %s27
      %p139 = scmp.eq.s32.totalorder %s138, 0
      %s141 = sadd.s32 %s140, 1
      %s142 = scalar_select %p139, %s140, %s141
      %p145 = pneg %p139
      %p146 = scmp.eq.s32.totalorder %s20, 1
      %p147 = por %p145, %p146
      %p148 = scmp.ne.s32.totalorder %s140, %s143
      %p149 = scmp.eq.s32.totalorder %s20, 0
      %p150 = por %p148, %p149
      %p151 = scmp.ne.s32.totalorder %s140, %s143
      %p152 = scmp.eq.s32.totalorder %s25, 1
      %p153 = por %p151, %p152
      %p154 = scmp.ne.s32.totalorder %s143, %s144
      %p155 = scmp.eq.s32.totalorder %s25, 0
      %p156 = por %p154, %p155
      %p157 = scmp.ne.s32.totalorder %s143, %s144
      %p158 = scmp.eq.s32.totalorder %s26, 1
      %p159 = por %p157, %p158
      %p161 = scmp.ne.s32.totalorder %s144, %s160
      %p162 = scmp.eq.s32.totalorder %s26, 0
      %p163 = por %p161, %p162
      %p164 = scmp.le.s32.totalorder 1, %s20
      %p165 = scmp.lt.s32.totalorder %s20, 3
      %p166 = pnand %p164, %p165
      %p167 = pneg %p166
      // Predicated region
      $region9: #{projection_network_forward.1} parent=5 // pred_check
        _
      $region10: #{projection_network_forward.1} parent=5 // pred_check_branch
        %169 = sbr.rel (%p166) target = $region12
      $region11: #{projection_network_forward.1} parent=5 // pred_region
        %s170 = ssub.s32 %s20, 1
        // Predicated region
        $region13: #{projection_network_forward.1} parent=11 // pred_check
          %p171 = pneg %p67
        $region14: #{projection_network_forward.1} parent=11 // pred_check_branch
          %173 = sbr.rel (%p171) target = $region16
        $region15: #{projection_network_forward.1} parent=11 // pred_region
          %s175 = ssub.s32 512, 512
          %176 = vsyncadd [#allocation8], %s175
          %s177 = sshll.u32 [#allocation7], 4
          %s178 = int_to_ptr.vmem [resolvable:$true] %s177
          %183 = dma.hbm_to_vmem [thread:$0]  %s2, 512, %s178, [#allocation8], 128, 128, 8
        $region16: #{projection_network_forward.1} parent=11 // pred_fallthru
          _
        // Predicated region
        $region17: #{projection_network_forward.1} parent=11 // pred_check
          %p184 = pneg %p88
        $region18: #{projection_network_forward.1} parent=11 // pred_check_branch
          %186 = sbr.rel (%p184) target = $region20
        $region19: #{projection_network_forward.1} parent=11 // pred_region
          _
        $region20: #{projection_network_forward.1} parent=11 // pred_fallthru
          _
        // Predicated region
        $region21: #{projection_network_forward.1} parent=11 // pred_check
          %p187 = pneg %p109
        $region22: #{projection_network_forward.1} parent=11 // pred_check_branch
          %189 = sbr.rel (%p187) target = $region24
        $region23: #{projection_network_forward.1} parent=11 // pred_region
          %s191 = ssub.s32 2048, 2048
          %192 = vsyncadd [#allocation8], %s191
          %s193 = sshll.u32 [#allocation9], 4
          %s194 = int_to_ptr.vmem [resolvable:$true] %s193
          %199 = dma.hbm_to_vmem [thread:$0]  %s4, 2048, %s194, [#allocation8], 128, 128, 8
        $region24: #{projection_network_forward.1} parent=11 // pred_fallthru
          _
        // Predicated region
        $region25: #{projection_network_forward.1} parent=11 // pred_check
          %p200 = pneg %p130
        $region26: #{projection_network_forward.1} parent=11 // pred_check_branch
          %202 = sbr.rel (%p200) target = $region28
        $region27: #{projection_network_forward.1} parent=11 // pred_region
          _
        $region28: #{projection_network_forward.1} parent=11 // pred_fallthru
          _
      $region12: #{projection_network_forward.1} parent=5 // pred_fallthru
        _
      %p203 = scmp.lt.s32.totalorder %s20, 2
      // Predicated region
      $region29: #{projection_network_forward.1} parent=5 // pred_check
        %p204 = pneg %p203
      $region30: #{projection_network_forward.1} parent=5 // pred_check_branch
        %206 = sbr.rel (%p204) target = $region32
      $region31: #{projection_network_forward.1} parent=5 // pred_region
        // Predicated region
        $region33: #{projection_network_forward.1} parent=31 // pred_check
          %p207 = pneg %p40
        $region34: #{projection_network_forward.1} parent=31 // pred_check_branch
          %209 = sbr.rel (%p207) target = $region36
        $region35: #{projection_network_forward.1} parent=31 // pred_region
          %s210 = sand.u32 %s30, 1
          %s211 = scalar_lea.sflag [#allocation5], %s210
          %s212 = sand.u32 %s30, 1
          %s213 = smul.addr %s212, 8
          %s214 = scalar_lea.vmem [#allocation4], %s213
          %s216 = ssub.s32 128, 128
          %217 = vsyncadd %s211, %s216
          %s218 = smul.addr %s20, 128
          %s219 = scalar_lea.hbm %s1, %s218
          %s221 = sshll.u32 %s214, 4
          %s222 = int_to_ptr.vmem [resolvable:$true] %s221
          %224 = dma.hbm_to_vmem [thread:$0]  %s219, 128, %s222, %s211
        $region36: #{projection_network_forward.1} parent=31 // pred_fallthru
          _
      $region32: #{projection_network_forward.1} parent=5 // pred_fallthru
        _
      %p225 = scmp.le.s32.totalorder 1, %s20
      %p226 = scmp.lt.s32.totalorder %s20, 3
      %p227 = pnand %p225, %p226
      %p228 = pneg %p227
      // Predicated region
      $region37: #{projection_network_forward.1} parent=5 // pred_check
        _
      $region38: #{projection_network_forward.1} parent=5 // pred_check_branch
        %230 = sbr.rel (%p227) target = $region40
      $region39: #{projection_network_forward.1} parent=5 // pred_region
        %s231 = ssub.s32 %s20, 1
        %s232 = sand.u32 %s33, 1
        %s233 = scalar_lea.sflag [#allocation5], %s232
        %s234 = sand.u32 %s33, 1
        %s235 = smul.addr %s234, 8
        %s236 = scalar_lea.vmem [#allocation4], %s235
        // Predicated region
        $region41: #{projection_network_forward.1} parent=39 // pred_check
          %p237 = pneg %p46
        $region42: #{projection_network_forward.1} parent=39 // pred_check_branch
          %239 = sbr.rel (%p237) target = $region44
        $region43: #{projection_network_forward.1} parent=39 // pred_region
          %240 = dma.done %s233, 128
        $region44: #{projection_network_forward.1} parent=39 // pred_fallthru
          _
        // Predicated region
        $region45: #{projection_network_forward.1} parent=39 // pred_check
          %p241 = pneg %p67
        $region46: #{projection_network_forward.1} parent=39 // pred_check_branch
          %243 = sbr.rel (%p241) target = $region48
        $region47: #{projection_network_forward.1} parent=39 // pred_region
          %244 = dma.done [#allocation8], 512
        $region48: #{projection_network_forward.1} parent=39 // pred_fallthru
          _
        // Predicated region
        $region49: #{projection_network_forward.1} parent=39 // pred_check
          %p245 = pneg %p109
        $region50: #{projection_network_forward.1} parent=39 // pred_check_branch
          %247 = sbr.rel (%p245) target = $region52
        $region51: #{projection_network_forward.1} parent=39 // pred_region
          %248 = dma.done [#allocation8], 2048
        $region52: #{projection_network_forward.1} parent=39 // pred_fallthru
          _
        %s249 = sand.u32 %s33, 1
        %s250 = scalar_lea.sflag [#allocation5], %s249
        %s251 = sand.u32 %s33, 1
        %s252 = smul.addr %s251, 8
        %s253 = scalar_lea.vmem [#allocation4], %s252
        %p254 = pneg %p46
        %p255 = pneg %p43
        %p256 = pneg %p67
        %p257 = pneg %p64
        %p258 = pneg %p88
        %p259 = pneg %p85
        %p260 = pneg %p109
        %p261 = pneg %p106
        %p262 = pneg %p130
        %p263 = pneg %p127
        %p264 = pneg %p156
        %p265 = pneg %p153
        %s266 = sand.u32 %s143, 1
        %s267 = scalar_lea.sflag [#allocation6], %s266
        %s268 = sand.u32 %s143, 1
        %s269 = smul.addr %s268, 8
        %s270 = scalar_lea.vmem [#allocation10], %s269
        %v271 = vld [vmem:[%s236] sm:$0xff]
        %v272 = vld [vmem:[#allocation7] sm:$0xff]
        %v273 = vld [vmem:[#allocation7 + $0x8] sm:$0xff]
        %v274 = vld [vmem:[#allocation7 + $0x10] sm:$0xff]
        %v275 = vld [vmem:[#allocation7 + $0x18] sm:$0xff]
        %v276 = vld [vmem:[%s3] sm:$0x1]
        %v278 = vlaneseq
        %v279 = vshrl.u32 %v278, 7
        %v280 = vsub.s32 0, %v279
        %v281 = vrot.slane %v276, %v280
        %vm283 = vcmask 261120
        %v285 = vsel %vm283, %v271, 0
        %287 = vmatprep.subr.mxu0 0.0
        %288 = vmatpush1.msra.mxu0 0.0
        %289 = vmatprep.subr.mxu0 0.0
        %290 = vmatpush1.msra.mxu0 0.0
        %291 = vmatprep.subr.mxu0 0.0
        %292 = vmatpush1.msra.mxu0 0.0
        %293 = vmatprep.subr.mxu0 0.0
        %294 = vmatpush1.msra.mxu0 0.0
        %295 = vmatprep.subr.mxu0 0.0
        %296 = vmatpush1.msra.mxu0 0.0
        %297 = vmatprep.subr.mxu0 0.0
        %298 = vmatpush1.msra.mxu0 0.0
        %299 = vmatprep.subr.mxu0 0.0
        %300 = vmatpush1.msra.mxu0 0.0
        %301 = vmatprep.subr.mxu0 0.0
        %302 = vmatpush1.msra.mxu0 0.0
        %303 = vmatprep.subr.mxu0 0.0
        %304 = vmatpush1.msra.mxu0 0.0
        %305 = vmatprep.subr.mxu0 0.0
        %306 = vmatpush1.msra.mxu0 0.0
        %307 = vmatprep.subr.mxu0 0.0
        %308 = vmatpush1.msra.mxu0 0.0
        %309 = vmatprep.subr.mxu0 0.0
        %310 = vmatpush1.msra.mxu0 0.0
        %311 = vmatprep.subr.mxu0 0.0
        %312 = vmatpush1.msra.mxu0 %v275
        %313 = vmatprep.subr.mxu0 0.0
        %314 = vmatpush1.msra.mxu0 %v274
        %315 = vmatprep.subr.mxu0 0.0
        %316 = vmatpush1.msra.mxu0 %v273
        %317 = vmatprep.subr.mxu0 0.0
        %318 = vmatpush1.msra.mxu0 %v272
        %319 = vmatprep.subr.mxu0 0.0
        %320 = vmatpush2.msra.mxu0 0.0
        %321 = vmatprep.subr.mxu0 0.0
        %322 = vmatpush2.msra.mxu0 0.0
        %323 = vmatprep.subr.mxu0 0.0
        %324 = vmatpush2.msra.mxu0 0.0
        %325 = vmatprep.subr.mxu0 0.0
        %326 = vmatpush2.msra.mxu0 0.0
        %327 = vmatprep.subr.mxu0 0.0
        %328 = vmatpush2.msra.mxu0 0.0
        %329 = vmatprep.subr.mxu0 0.0
        %330 = vmatpush2.msra.mxu0 0.0
        %331 = vmatprep.subr.mxu0 0.0
        %332 = vmatpush2.msra.mxu0 0.0
        %333 = vmatprep.subr.mxu0 0.0
        %334 = vmatpush2.msra.mxu0 0.0
        %335 = vmatprep.subr.mxu0 0.0
        %336 = vmatpush2.msra.mxu0 0.0
        %337 = vmatprep.subr.mxu0 0.0
        %338 = vmatpush2.msra.mxu0 0.0
        %339 = vmatprep.subr.mxu0 0.0
        %340 = vmatpush2.msra.mxu0 0.0
        %341 = vmatprep.subr.mxu0 0.0
        %342 = vmatpush2.msra.mxu0 0.0
        %343 = vmatprep.subr.mxu0 0.0
        %344 = vmatpush2.msra.mxu0 0.0
        %345 = vmatprep.subr.mxu0 0.0
        %346 = vmatpush2.msra.mxu0 0.0
        %347 = vmatprep.subr.mxu0 0.0
        %348 = vmatpush2.msra.mxu0 0.0
        %349 = vmatprep.subr.mxu0 0.0
        %350 = vmatpush2.msra.mxu0 0.0
        %351 = vmatprep.mubr.f32.mxu0 0.0
        %352 = vmatmul.mubr.f32.gmra.mxu0 %v285
        %v353 = vpop.f32.mrf.mxu0
        %v354 = vadd.f32 %v281, %v353
        %v355 = vpop.f32.mrf.mxu0
        %356 = vdwg.mxu0
        %v357 = vmax.f32 %v354, 0.0
        %v358 = vld [vmem:[#allocation9] sm:$0xff]
        %v359 = vld [vmem:[#allocation9 + $0x8] sm:$0xff]
        %v360 = vld [vmem:[#allocation9 + $0x10] sm:$0xff]
        %v361 = vld [vmem:[#allocation9 + $0x18] sm:$0xff]
        %v362 = vld [vmem:[#allocation9 + $0x20] sm:$0xff]
        %v363 = vld [vmem:[#allocation9 + $0x28] sm:$0xff]
        %v364 = vld [vmem:[#allocation9 + $0x30] sm:$0xff]
        %v365 = vld [vmem:[#allocation9 + $0x38] sm:$0xff]
        %v366 = vld [vmem:[#allocation9 + $0x40] sm:$0xff]
        %v367 = vld [vmem:[#allocation9 + $0x48] sm:$0xff]
        %v368 = vld [vmem:[#allocation9 + $0x50] sm:$0xff]
        %v369 = vld [vmem:[#allocation9 + $0x58] sm:$0xff]
        %v370 = vld [vmem:[#allocation9 + $0x60] sm:$0xff]
        %v371 = vld [vmem:[#allocation9 + $0x68] sm:$0xff]
        %v372 = vld [vmem:[#allocation9 + $0x70] sm:$0xff]
        %v373 = vld [vmem:[#allocation9 + $0x78] sm:$0xff]
        %v374 = vld [vmem:[%s5] sm:$0x1]
        %v376 = vlaneseq
        %v377 = vshrl.u32 %v376, 7
        %v378 = vsub.s32 0, %v377
        %v379 = vrot.slane %v374, %v378
        %381 = vmatprep.subr.mxu0 0.0
        %382 = vmatpush1.msra.mxu0 %v373
        %383 = vmatprep.subr.mxu0 0.0
        %384 = vmatpush1.msra.mxu0 %v372
        %385 = vmatprep.subr.mxu0 0.0
        %386 = vmatpush1.msra.mxu0 %v371
        %387 = vmatprep.subr.mxu0 0.0
        %388 = vmatpush1.msra.mxu0 %v370
        %389 = vmatprep.subr.mxu0 0.0
        %390 = vmatpush1.msra.mxu0 %v369
        %391 = vmatprep.subr.mxu0 0.0
        %392 = vmatpush1.msra.mxu0 %v368
        %393 = vmatprep.subr.mxu0 0.0
        %394 = vmatpush1.msra.mxu0 %v367
        %395 = vmatprep.subr.mxu0 0.0
        %396 = vmatpush1.msra.mxu0 %v366
        %397 = vmatprep.subr.mxu0 0.0
        %398 = vmatpush1.msra.mxu0 %v365
        %399 = vmatprep.subr.mxu0 0.0
        %400 = vmatpush1.msra.mxu0 %v364
        %401 = vmatprep.subr.mxu0 0.0
        %402 = vmatpush1.msra.mxu0 %v363
        %403 = vmatprep.subr.mxu0 0.0
        %404 = vmatpush1.msra.mxu0 %v362
        %405 = vmatprep.subr.mxu0 0.0
        %406 = vmatpush1.msra.mxu0 %v361
        %407 = vmatprep.subr.mxu0 0.0
        %408 = vmatpush1.msra.mxu0 %v360
        %409 = vmatprep.subr.mxu0 0.0
        %410 = vmatpush1.msra.mxu0 %v359
        %411 = vmatprep.subr.mxu0 0.0
        %412 = vmatpush1.msra.mxu0 %v358
        %413 = vmatprep.subr.mxu0 0.0
        %414 = vmatpush2.msra.mxu0 0.0
        %415 = vmatprep.subr.mxu0 0.0
        %416 = vmatpush2.msra.mxu0 0.0
        %417 = vmatprep.subr.mxu0 0.0
        %418 = vmatpush2.msra.mxu0 0.0
        %419 = vmatprep.subr.mxu0 0.0
        %420 = vmatpush2.msra.mxu0 0.0
        %421 = vmatprep.subr.mxu0 0.0
        %422 = vmatpush2.msra.mxu0 0.0
        %423 = vmatprep.subr.mxu0 0.0
        %424 = vmatpush2.msra.mxu0 0.0
        %425 = vmatprep.subr.mxu0 0.0
        %426 = vmatpush2.msra.mxu0 0.0
        %427 = vmatprep.subr.mxu0 0.0
        %428 = vmatpush2.msra.mxu0 0.0
        %429 = vmatprep.subr.mxu0 0.0
        %430 = vmatpush2.msra.mxu0 0.0
        %431 = vmatprep.subr.mxu0 0.0
        %432 = vmatpush2.msra.mxu0 0.0
        %433 = vmatprep.subr.mxu0 0.0
        %434 = vmatpush2.msra.mxu0 0.0
        %435 = vmatprep.subr.mxu0 0.0
        %436 = vmatpush2.msra.mxu0 0.0
        %437 = vmatprep.subr.mxu0 0.0
        %438 = vmatpush2.msra.mxu0 0.0
        %439 = vmatprep.subr.mxu0 0.0
        %440 = vmatpush2.msra.mxu0 0.0
        %441 = vmatprep.subr.mxu0 0.0
        %442 = vmatpush2.msra.mxu0 0.0
        %443 = vmatprep.subr.mxu0 0.0
        %444 = vmatpush2.msra.mxu0 0.0
        %445 = vmatprep.mubr.f32.mxu0 0.0
        %446 = vmatmul.mubr.f32.gmra.mxu0 %v357
        %v447 = vpop.f32.mrf.mxu0
        %v448 = vadd.f32 %v379, %v447
        %v449 = vpop.f32.mrf.mxu0
        %450 = vdwg.mxu0
        %451 = vst [vmem:[%s270] sm:$0xff] %v448
        %s452 = sand.u32 %s143, 1
        %s453 = scalar_lea.sflag [#allocation6], %s452
        %s454 = sand.u32 %s143, 1
        %s455 = smul.addr %s454, 8
        %s456 = scalar_lea.vmem [#allocation10], %s455
        // Predicated region
        $region53: #{projection_network_forward.1} parent=39 // pred_check
          %p457 = pneg %p153
        $region54: #{projection_network_forward.1} parent=39 // pred_check_branch
          %459 = sbr.rel (%p457) target = $region56
        $region55: #{projection_network_forward.1} parent=39 // pred_region
          %s461 = ssub.s32 128, 128
          %462 = vsyncadd %s453, %s461
          %s463 = smul.addr %s25, 128
          %s464 = scalar_lea.hbm %s6, %s463
          %s466 = sshll.u32 %s456, 4
          %s467 = int_to_ptr.vmem [resolvable:$true] %s466
          %469 = dma.vmem_to_hbm [thread:$0]  %s467, 128, %s464, %s453
        $region56: #{projection_network_forward.1} parent=39 // pred_fallthru
          _
      $region40: #{projection_network_forward.1} parent=5 // pred_fallthru
        _
      %p470 = scmp.le.s32.totalorder 2, %s20
      // Predicated region
      $region57: #{projection_network_forward.1} parent=5 // pred_check
        %p471 = pneg %p470
      $region58: #{projection_network_forward.1} parent=5 // pred_check_branch
        %473 = sbr.rel (%p471) target = $region60
      $region59: #{projection_network_forward.1} parent=5 // pred_region
        %s474 = ssub.s32 %s20, 2
        // Predicated region
        $region61: #{projection_network_forward.1} parent=59 // pred_check
          %p475 = pneg %p159
        $region62: #{projection_network_forward.1} parent=59 // pred_check_branch
          %477 = sbr.rel (%p475) target = $region64
        $region63: #{projection_network_forward.1} parent=59 // pred_region
          %s478 = sand.u32 %s144, 1
          %s479 = scalar_lea.sflag [#allocation6], %s478
          %s480 = sand.u32 %s144, 1
          %s481 = smul.addr %s480, 8
          %s482 = scalar_lea.vmem [#allocation10], %s481
          %483 = dma.done %s479, 128
        $region64: #{projection_network_forward.1} parent=59 // pred_fallthru
          _
      $region60: #{projection_network_forward.1} parent=5 // pred_fallthru
        _
    $region6: #{projection_network_forward.1} parent=1 // loop_footer
      %s24 = sadd.s32 1, %s20
    $region7: #{projection_network_forward.1} parent=1 // loop_footer_branch
      %19 = sbr.rel target = $region3
    $region8: #{projection_network_forward.1} parent=1 // loop_exit
      _
    %484 = vsyncpa [#allocation5], 1
    %s485 = scalar_lea.sflag [#allocation5], 1
    %486 = vsyncpa %s485, 1
    %487 = vsyncpa [#allocation8], 1
    %488 = vsyncpa [#allocation6], 1
    %s489 = scalar_lea.sflag [#allocation6], 1
    %490 = vsyncpa %s489, 1

</llo_original>
